<compile_context>
chip_gen: v7x
topology: tpu7x:2x2x1
jax: 0.10.0
libtpu: 0.0.40
codegen_flags: <defaults>
</compile_context>

<pallas_src>
import functools

import jax
import jax.numpy as jnp
from jax.experimental import pallas as pl
from jax.experimental.pallas import tpu as pltpu

_LANE = 128   # lane width
_SUB = 16     # bf16-friendly sublane multiple


def _round_up(x, m):
    return (x + m - 1) // m * m


def _device_kind():
    try:
        return jax.devices()[0].device_kind.lower()
    except Exception:
        return ""


_KIND = _device_kind()
_OLD_GEN = any(t in _KIND for t in ("v2", "v3", "v4", "v5"))
_TN = 128 if _OLD_GEN else 256                 # MXU-matched default N tile
_MULTI_TC = ("v7" in _KIND) or ("v4" in _KIND) or ("v5p" in _KIND)  # 2 TensorCores/chip


# ---------------------------------------------------------------------------
# Pallas GEMM kernel: out = act(A @ W + bias [+ residual])   (BN scale pre-folded into W)
# Single K tile, grid over (M tiles, N tiles), both axes "parallel" for megacore.
# ---------------------------------------------------------------------------
@functools.lru_cache(maxsize=None)
def _build_gemm(Mp, Kp, Np, tm, tn, relu, has_res, out_dtype_name):
    out_dtype = jnp.dtype(out_dtype_name)
    grid = (Mp // tm, Np // tn)

    def kernel(*refs):
        if has_res:
            a_ref, b_ref, c_ref, r_ref, o_ref = refs
        else:
            a_ref, b_ref, c_ref, o_ref = refs
            r_ref = None
        acc = jnp.dot(a_ref[...], b_ref[...], preferred_element_type=jnp.float32)
        out = acc + c_ref[...]
        if r_ref is not None:
            out = out + r_ref[...].astype(jnp.float32)
        if relu:
            out = jnp.maximum(out, 0.0)
        o_ref[...] = out.astype(o_ref.dtype)

    in_specs = [
        pl.BlockSpec((tm, Kp), lambda i, j: (i, 0)),
        pl.BlockSpec((Kp, tn), lambda i, j: (0, j)),
        pl.BlockSpec((1, tn), lambda i, j: (0, j)),
    ]
    if has_res:
        in_specs.append(pl.BlockSpec((tm, tn), lambda i, j: (i, j)))

    return pl.pallas_call(
        kernel,
        out_shape=jax.ShapeDtypeStruct((Mp, Np), out_dtype),
        grid_spec=pltpu.PrefetchScalarGridSpec(
            num_scalar_prefetch=0,
            grid=grid,
            in_specs=in_specs,
            out_specs=pl.BlockSpec((tm, tn), lambda i, j: (i, j)),
        ),
        compiler_params=pltpu.CompilerParams(
            dimension_semantics=("parallel", "parallel")),
    )


def _pick_tn(Mp, tm, Kp, Np, itemsize):
    """Per-generation N-tile choice (divides Np; Np is always a multiple of 128 here)."""
    cands = [c for c in (2048, 1024, 512, 256, 128) if c <= Np and Np % c == 0]
    if not cands:
        return Np
    if _MULTI_TC:
        tn = min(_TN, cands[0])
        # keep >=2 grid programs so both TensorCores get work
        if (Mp // tm == 1 and Np // tn < 2 and Np >= 2 * _LANE
                and (Np // 2) % _LANE == 0):
            tn = Np // 2
        return tn
    if Mp <= 64:
        # single-TC chips: consolidate tiny-M GEMMs into one big N tile (fewer grid steps),
        # but keep the B block <= 6 MiB so double-buffering fits the default scoped VMEM.
        budget = 6 << 20
        for c in cands:
            if Kp * c * itemsize <= budget:
                return c
        return cands[-1]
    return min(_TN, cands[0])


def gemm_prepped(a, w_p, b_p, n_out, residual=None, relu=True,
                 out_dtype=jnp.bfloat16):
    """A:(M,K); w_p:(Kp,Np) pre-padded/cast (BN scale folded); b_p:(1,Np) f32."""
    M, K = a.shape
    Kp, Np = w_p.shape
    if M <= 256:
        tm = Mp = _round_up(M, _SUB)
    else:
        tm = 256
        Mp = _round_up(M, tm)
    tn = _pick_tn(Mp, tm, Kp, Np, jnp.dtype(w_p.dtype).itemsize)

    a = a.astype(w_p.dtype)
    if Mp != M or Kp != K:                      # skip no-op pads (pure HBM copy otherwise)
        a = jnp.pad(a, ((0, Mp - M), (0, Kp - K)))
    args = [a, w_p, b_p]
    if residual is not None:
        r = residual
        if Mp != M or Np != r.shape[1]:
            r = jnp.pad(r, ((0, Mp - M), (0, Np - r.shape[1])))
        args.append(r)

    fn = _build_gemm(Mp, Kp, Np, tm, tn, bool(relu), residual is not None,
                     jnp.dtype(out_dtype).name)
    out = fn(*args)
    if Mp != M or Np != n_out:
        out = out[:M, :n_out]
    return out


# ---------------------------------------------------------------------------
# Fused 3x3 / stride-1 / pad-1 conv kernel (no materialized im2col).
# Grid: (batch, output-row blocks, N tiles).  The padded input is passed TH+2 times as
# single-row view operands; the index_map applies the tap row shift, the kernel applies
# the tap column shift via static slices and runs 9*TH MXU dots with a fused epilogue.
# ---------------------------------------------------------------------------
def _pick_th(Ho, Wo):
    """Rows of output per grid step: smallest divisor of Ho with th*Wo %8==0 and >=64
    (else the largest valid); None -> use the im2col fallback."""
    best = None
    for d in (1, 2, 4, 8):
        if Ho % d or (d * Wo) % 8 or d * Wo > 256:
            continue
        best = d
        if d * Wo >= 64:
            break
    return best


def _fused_tn(n_imgs, rblocks, C, Np):
    tn = 128
    for c in (512, 256, 128):
        if c <= Np and Np % c == 0 and 9 * C * c * 2 <= (6 << 20):
            tn = c
            break
    if (_MULTI_TC and n_imgs * rblocks == 1 and Np // tn < 2
            and Np >= 2 * _LANE and (Np // 2) % _LANE == 0):
        tn = Np // 2
    return tn


@functools.lru_cache(maxsize=None)
def _build_conv3(N, Hp, Wp, C, Ho, Wo, th, Np, tn, relu, out_dtype_name):
    out_dtype = jnp.dtype(out_dtype_name)
    n_rows = th + 2
    rblocks = Ho // th
    grid = (N, rblocks, Np // tn)

    def kernel(*refs):
        xs = refs[:n_rows]                      # each (1, 1, Wp, C) bf16 padded input row
        w_ref, b_ref, o_ref = refs[n_rows:]
        bias = b_ref[...]                       # (1, tn) f32
        for t in range(th):                     # output rows in this block
            acc = jnp.zeros((Wo, tn), jnp.float32)
            for di in range(3):
                for dj in range(3):
                    a = xs[t + di][0, 0, dj:dj + Wo, :]           # (Wo, C)
                    acc = acc + jnp.dot(a, w_ref[di * 3 + dj],    # (C, tn)
                                        preferred_element_type=jnp.float32)
            out = acc + bias
            if relu:
                out = jnp.maximum(out, 0.0)
            o_ref[t * Wo:(t + 1) * Wo, :] = out.astype(o_ref.dtype)

    def _row_map(k):
        # block size 1 along H -> block index == element row index == r*th + k
        return lambda n, r, j: (n, r * th + k, 0, 0)

    in_specs = [pl.BlockSpec((1, 1, Wp, C), _row_map(k)) for k in range(n_rows)]
    in_specs.append(pl.BlockSpec((9, C, tn), lambda n, r, j: (0, 0, j)))
    in_specs.append(pl.BlockSpec((1, tn), lambda n, r, j: (0, j)))

    return pl.pallas_call(
        kernel,
        out_shape=jax.ShapeDtypeStruct((N * Ho * Wo, Np), out_dtype),
        grid_spec=pltpu.PrefetchScalarGridSpec(
            num_scalar_prefetch=0,
            grid=grid,
            in_specs=in_specs,
            out_specs=pl.BlockSpec((th * Wo, tn),
                                   lambda n, r, j: (n * rblocks + r, j)),
        ),
        compiler_params=pltpu.CompilerParams(
            dimension_semantics=("parallel", "parallel", "parallel")),
    )


def fused_conv3x3(x, cp, relu, out_dtype):
    """3x3 / stride-1 / pad-1 conv; returns None if the shape can't use the fused path."""
    N, H, W, C = x.shape
    Ho, Wo = H, W
    th = _pick_th(Ho, Wo)
    if th is None:
        return None
    Np = cp['w9'].shape[-1]
    rblocks = Ho // th
    tn = _fused_tn(N, rblocks, C, Np)
    xp = jnp.pad(x, ((0, 0), (1, 1), (1, 1), (0, 0)))
    fn = _build_conv3(N, H + 2, W + 2, C, Ho, Wo, th, Np, tn, bool(relu),
                      jnp.dtype(out_dtype).name)
    out = fn(*([xp] * (th + 2)), cp['w9'], cp['b'])
    if Np != cp['cout']:
        out = out[:, :cp['cout']]
    return out.reshape(N, Ho, Wo, cp['cout'])


# ---------------------------------------------------------------------------
# Maxpool 3x3 / stride-2 / pad-1: elementwise-max tree over the 9 strided views.
# (Left to XLA fusion per perf review: avoids the 9x HBM stack a Pallas reduce would need.)
# ---------------------------------------------------------------------------
def maxpool_3x3_s2_p1(x):
    N, H, W, C = x.shape
    Ho = (H + 2 - 3) // 2 + 1
    Wo = (W + 2 - 3) // 2 + 1
    xp = jnp.pad(x, ((0, 0), (1, 1), (1, 1), (0, 0)), constant_values=-jnp.inf)
    out = None
    for i in range(3):
        for j in range(3):
            v = xp[:, i:i + 2 * (Ho - 1) + 1:2, j:j + 2 * (Wo - 1) + 1:2, :]
            out = v if out is None else jnp.maximum(out, v)
    return out


# ---------------------------------------------------------------------------
# Pallas global-avg-pool + BatchNorm1d (inference) in a single grid step -> features f (f32)
# ---------------------------------------------------------------------------
@functools.lru_cache(maxsize=None)
def _build_pool_bn(N, HW, C):
    inv = 1.0 / HW

    def kernel(x_ref, s_ref, b_ref, o_ref):
        m = jnp.sum(x_ref[...].astype(jnp.float32), axis=1) * inv
        o_ref[...] = m * s_ref[...] + b_ref[...]

    return pl.pallas_call(
        kernel,
        out_shape=jax.ShapeDtypeStruct((N, C), jnp.float32),
        grid_spec=pltpu.PrefetchScalarGridSpec(
            num_scalar_prefetch=0, grid=(1,),
            in_specs=[pl.BlockSpec((N, HW, C), lambda i: (0, 0, 0)),
                      pl.BlockSpec((1, C), lambda i: (0, 0)),
                      pl.BlockSpec((1, C), lambda i: (0, 0))],
            out_specs=pl.BlockSpec((N, C), lambda i: (0, 0))),
        compiler_params=pltpu.CompilerParams(
            dimension_semantics=("arbitrary",)),
    )


# ---------------------------------------------------------------------------
# im2col glue (fallback: 7x7 stem, stride-2 / tiny-spatial 3x3, strided 1x1 downsample)
# ---------------------------------------------------------------------------
def _im2col(x, kh, kw, stride, pad):
    N, H, W, C = x.shape
    if pad:
        x = jnp.pad(x, ((0, 0), (pad, pad), (pad, pad), (0, 0)))
    Ho = (H + 2 * pad - kh) // stride + 1
    Wo = (W + 2 * pad - kw) // stride + 1
    cols = []
    for i in range(kh):
        for j in range(kw):
            cols.append(x[:, i:i + (Ho - 1) * stride + 1:stride,
                          j:j + (Wo - 1) * stride + 1:stride, :])
    patches = jnp.concatenate(cols, axis=-1) if len(cols) > 1 else cols[0]
    return patches.reshape(N * Ho * Wo, kh * kw * C), (N, Ho, Wo)


def conv_bn(x, cp, relu=True, residual=None, out_dtype=jnp.bfloat16):
    # 1x1 stride-1: plain GEMM, no im2col, no padding in the common case.
    if cp['kh'] == 1 and cp['kw'] == 1 and cp['stride'] == 1:
        N, H, W, _ = x.shape
        a = x.reshape(N * H * W, cp['cin'])
        res = None if residual is None else residual.reshape(N * H * W, cp['cout'])
        out = gemm_prepped(a, cp['w'], cp['b'], cp['cout'], residual=res,
                           relu=relu, out_dtype=out_dtype)
        return out.reshape(N, H, W, cp['cout'])

    # 3x3 stride-1: fused window-read GEMM (no materialized im2col).
    if (cp['kh'] == 3 and cp['kw'] == 3 and cp['stride'] == 1 and cp['pad'] == 1
            and residual is None and 'w9' in cp):
        out = fused_conv3x3(x, cp, relu, out_dtype)
        if out is not None:
            return out

    # Fallback: materialized im2col (stem, stride-2 3x3, tiny-spatial deep-stage 3x3).
    patches, (N, Ho, Wo) = _im2col(x, cp['kh'], cp['kw'], cp['stride'], cp['pad'])
    res = None if residual is None else residual.reshape(N * Ho * Wo, cp['cout'])
    out = gemm_prepped(patches, cp['w'], cp['b'], cp['cout'], residual=res,
                       relu=relu, out_dtype=out_dtype)
    return out.reshape(N, Ho, Wo, cp['cout'])


def _bn_fold(bn, eps=1e-5):
    scale = bn['gamma'] / jnp.sqrt(bn['var'] + eps)
    bias = bn['beta'] - bn['mean'] * scale
    return scale, bias


# ---------------------------------------------------------------------------
# Deterministic synthetic ResNet50 parameters (raw, f32)
# ---------------------------------------------------------------------------
def _init_bn(key, c):
    k1, k2, k3, k4 = jax.random.split(key, 4)
    return dict(
        gamma=1.0 + 0.1 * jax.random.normal(k1, (c,), jnp.float32),
        beta=0.05 * jax.random.normal(k2, (c,), jnp.float32),
        mean=0.05 * jax.random.normal(k3, (c,), jnp.float32),
        var=1.0 + 0.1 * jnp.abs(jax.random.normal(k4, (c,), jnp.float32)),
    )


def _init_conv(key, kh, kw, cin, cout):
    fan_in = kh * kw * cin
    return jax.random.normal(key, (kh, kw, cin, cout), jnp.float32) * (2.0 / fan_in) ** 0.5


def init_resnet50_params(key, num_classes):
    keys = iter(jax.random.split(key, 512))
    p = {'conv1_w': _init_conv(next(keys), 7, 7, 3, 64),
         'bn1': _init_bn(next(keys), 64)}
    cfg = [(64, 3, 1), (128, 4, 2), (256, 6, 2), (512, 3, 2)]
    inplanes = 64
    layers = []
    for planes, nblocks, stride in cfg:
        blocks = []
        for b in range(nblocks):
            s = stride if b == 0 else 1
            blk = {'stride': s,
                   'w1': _init_conv(next(keys), 1, 1, inplanes, planes),
                   'bn1': _init_bn(next(keys), planes),
                   'w2': _init_conv(next(keys), 3, 3, planes, planes),
                   'bn2': _init_bn(next(keys), planes),
                   'w3': _init_conv(next(keys), 1, 1, planes, planes * 4),
                   'bn3': _init_bn(next(keys), planes * 4)}
            if b == 0:  # downsample branch
                blk['wd'] = _init_conv(next(keys), 1, 1, inplanes, planes * 4)
                blk['bnd'] = _init_bn(next(keys), planes * 4)
            blocks.append(blk)
            inplanes = planes * 4
        layers.append(blocks)
    p['layers'] = layers
    p['bn_feat'] = _init_bn(next(keys), 2048)                       # BatchNorm1d(2048)
    p['fc_wt'] = jax.random.normal(next(keys), (2048, num_classes),
                                   jnp.float32) * (1.0 / 2048) ** 0.5
    p['fc_b'] = 0.01 * jax.random.normal(next(keys), (num_classes,), jnp.float32)
    return p


# ---------------------------------------------------------------------------
# One-time parameter prep: fold BN scale into the weights, reshape to (K, Cout) and
# (9, Cin, Cout) layouts, cast to bf16, pre-pad K (to 16) / N (to 128).
# ---------------------------------------------------------------------------
def _prep_conv(w, bn, stride, pad, dtype=jnp.bfloat16):
    kh, kw, cin, cout = w.shape
    s, b = _bn_fold(bn)
    w = w * s                                   # fold BN scale into the weight (f32)
    K, N = kh * kw * cin, cout
    Kp, Np = _round_up(K, _SUB), _round_up(N, _LANE)
    w_p = jnp.pad(w.reshape(K, N).astype(dtype), ((0, Kp - K), (0, Np - N)))
    b_p = jnp.pad(b.reshape(1, N).astype(jnp.float32), ((0, 0), (0, Np - N)))
    cp = {'w': w_p, 'b': b_p, 'kh': kh, 'kw': kw, 'cin': cin, 'cout': N,
          'stride': stride, 'pad': pad}
    if kh == 3 and kw == 3:
        # (9, Cin, Np) tap-major layout for the fused conv kernel
        cp['w9'] = jnp.pad(w.astype(dtype).reshape(9, cin, N),
                           ((0, 0), (0, 0), (0, Np - N)))
    return cp


def prep_resnet50_params(raw, num_classes):
    pp = {'stem': _prep_conv(raw['conv1_w'], raw['bn1'], stride=2, pad=3)}
    layers = []
    for blocks in raw['layers']:
        pb = []
        for blk in blocks:
            d = {'c1': _prep_conv(blk['w1'], blk['bn1'], 1, 0),
                 'c2': _prep_conv(blk['w2'], blk['bn2'], blk['stride'], 1),
                 'c3': _prep_conv(blk['w3'], blk['bn3'], 1, 0)}
            if 'wd' in blk:
                d['cd'] = _prep_conv(blk['wd'], blk['bnd'], blk['stride'], 0)
            pb.append(d)
        layers.append(pb)
    pp['layers'] = layers
    sf, bf = _bn_fold(raw['bn_feat'])
    pp['bn_feat_s'] = sf.reshape(1, -1).astype(jnp.float32)
    pp['bn_feat_b'] = bf.reshape(1, -1).astype(jnp.float32)
    # classifier kept in f32 (tiny); bias carried through the GEMM epilogue
    nc = num_classes
    Np = _round_up(nc, _LANE)
    pp['fc_w'] = jnp.pad(raw['fc_wt'], ((0, 0), (0, Np - nc)))
    pp['fc_b'] = jnp.pad(raw['fc_b'].reshape(1, nc), ((0, 0), (0, Np - nc)))
    pp['num_classes'] = nc
    return pp


# ---------------------------------------------------------------------------
# Forward pass (matches ResNet50.forward: returns (logits y, features f))
# ---------------------------------------------------------------------------
def resnet50_forward(x_nchw, pp):
    x = jnp.transpose(x_nchw, (0, 2, 3, 1)).astype(jnp.bfloat16)  # NCHW -> NHWC, bf16
    x = conv_bn(x, pp['stem'], relu=True)
    x = maxpool_3x3_s2_p1(x)

    for blocks in pp['layers']:
        for blk in blocks:
            identity = conv_bn(x, blk['cd'], relu=False) if 'cd' in blk else x
            out = conv_bn(x, blk['c1'], relu=True)
            out = conv_bn(out, blk['c2'], relu=True)
            x = conv_bn(out, blk['c3'], relu=True, residual=identity)

    # x: [N, Hf, Wf, 2048]; global avg_pool2d + BatchNorm1d -> f (f32), single grid step
    N, Hf, Wf, C = x.shape
    f = _build_pool_bn(N, Hf * Wf, C)(
        x.reshape(N, Hf * Wf, C), pp['bn_feat_s'], pp['bn_feat_b'])

    # classifier: y = f @ W^T + b  (f32 GEMM)
    y = gemm_prepped(f, pp['fc_w'], pp['fc_b'], pp['num_classes'],
                     residual=None, relu=False, out_dtype=jnp.float32)
    return y, f


if __name__ == "__main__":
    num_classes = 16
    key = jax.random.PRNGKey(0)
    pk, xk = jax.random.split(key)
    raw_params = init_resnet50_params(pk, num_classes)
    params = prep_resnet50_params(raw_params, num_classes)
    x = jax.random.normal(xk, (2, 3, 64, 64), jnp.float32)  # NCHW like the PyTorch input
    y, f = resnet50_forward(x, params)
    jax.block_until_ready((y, f))
    assert y.shape == (2, num_classes), y.shape
    assert f.shape == (2, 2048), f.shape
    assert bool(jnp.all(jnp.isfinite(y))) and bool(jnp.all(jnp.isfinite(f)))
    print("KERNEL_OK")
</pallas_src>

<mosaic_0001>
module attributes {stable_mosaic.version = 11 : i64} {
  func.func @kernel(%arg0: i32, %arg1: i32, %arg2: memref<256x160xbf16, #tpu.memory_space<vmem>>, %arg3: memref<160x128xbf16, #tpu.memory_space<vmem>>, %arg4: memref<1x128xf32, #tpu.memory_space<vmem>>, %arg5: memref<256x128xbf16, #tpu.memory_space<vmem>>) attributes {dimension_semantics = [#tpu.dimension_semantics<parallel>, #tpu.dimension_semantics<parallel>], iteration_bounds = array<i64: 8, 1>, scalar_prefetch = 0 : i64, scratch_operands = 0 : i64, tpu.core_type = #tpu.core_type<tc>, window_params = [{transform_indices = @transform_0, window_bounds = array<i64: 256, 160>}, {transform_indices = @transform_1, window_bounds = array<i64: 160, 128>}, {transform_indices = @transform_2, window_bounds = array<i64: 1, 128>}, {transform_indices = @transform_3, window_bounds = array<i64: 256, 128>}]} {
    %c0 = arith.constant 0 : index
    %c0_0 = arith.constant 0 : index
    %0 = vector.load %arg2[%c0, %c0_0] : memref<256x160xbf16, #tpu.memory_space<vmem>>, vector<256x160xbf16>
    %c0_1 = arith.constant 0 : index
    %c0_2 = arith.constant 0 : index
    %1 = vector.load %arg3[%c0_1, %c0_2] : memref<160x128xbf16, #tpu.memory_space<vmem>>, vector<160x128xbf16>
    %cst = arith.constant dense<0.000000e+00> : vector<256x128xf32>
    %2 = tpu.matmul %0, %1, %cst {dimension_numbers = #tpu.dot_dimension_numbers<[1], [0], [0], [1], [0, 0, 1, 1], [], []>} : vector<256x160xbf16>, vector<160x128xbf16>, vector<256x128xf32> -> vector<256x128xf32>
    %c0_3 = arith.constant 0 : index
    %c0_4 = arith.constant 0 : index
    %3 = vector.load %arg4[%c0_3, %c0_4] : memref<1x128xf32, #tpu.memory_space<vmem>>, vector<1x128xf32>
    %4 = vector.broadcast %3 : vector<1x128xf32> to vector<256x128xf32>
    %5 = arith.addf %2, %4 : vector<256x128xf32>
    %cst_5 = arith.constant 0.000000e+00 : f32
    %6 = vector.broadcast %cst_5 : f32 to vector<256x128xf32>
    %7 = arith.maximumf %5, %6 : vector<256x128xf32>
    %8 = arith.truncf %7 : vector<256x128xf32> to vector<256x128xbf16>
    %c0_6 = arith.constant 0 : index
    %c0_7 = arith.constant 0 : index
    %9 = vector.load %arg5[%c0_6, %c0_7] : memref<256x128xbf16, #tpu.memory_space<vmem>>, vector<256x128xbf16>
    tpu.vector_store %arg5[%c0_6, %c0_7], %8 {strides = array<i32>} : memref<256x128xbf16, #tpu.memory_space<vmem>>, vector<256x128xbf16>,
    return
  }
  func.func @transform_0(%arg0: i32, %arg1: i32) -> (i32, i32) {
    %c0_i32 = arith.constant 0 : i32
    %c0_i32_0 = arith.constant 0 : i32
    return %arg0, %c0_i32 : i32, i32
  }
  func.func @transform_1(%arg0: i32, %arg1: i32) -> (i32, i32) {
    %c0_i32 = arith.constant 0 : i32
    %c0_i32_0 = arith.constant 0 : i32
    return %c0_i32, %arg1 : i32, i32
  }
  func.func @transform_2(%arg0: i32, %arg1: i32) -> (i32, i32) {
    %c0_i32 = arith.constant 0 : i32
    %c0_i32_0 = arith.constant 0 : i32
    return %c0_i32, %arg1 : i32, i32
  }
  func.func @transform_3(%arg0: i32, %arg1: i32) -> (i32, i32) {
    %c0_i32 = arith.constant 0 : i32
    return %arg0, %arg1 : i32, i32
  }
}

</mosaic_0001>

<llo_original>
// kernel: tpu_custom_call.1
$region0: #{tpu_custom_call.1}
  #allocation0 [shape = 'u32[]', space=smem, size = 0x4, offset = 0x4, fixed_abs, tag = 'smem constant byte address 0x4 - core index']
  #allocation1 [shape = 'u32[144,128]{1,0:T(1,128)}', space=vmem, size = 0x12000, scoped, tag = 'internal scratch']
  %s0 = inlined_call_operand.vmem [shape: bf16[2048,160], index: 0, kind: input, shape index: {}]
  %s1 = inlined_call_operand.vmem [shape: bf16[160,128], index: 1, kind: input, shape index: {}]
  %s2 = inlined_call_operand.vmem [shape: f32[1,128], index: 2, kind: input, shape index: {}]
  %s3 = inlined_call_operand.hbm [shape: bf16[2048,128], index: 3, kind: output, shape index: {}]
  %s4 = sld [smem:[#allocation0]]
  $region45: #{tpu_custom_call.1} parent=0
    _
  %s6 = ssub.s32 1, %s4
  %s7 = scalar_select 0, %s6, %s4
  $region1: #{tpu_custom_call.1} parent=0
    #allocation2 [shape = 'u8[131072]{0}', space=vmem, size = 0x20000, scoped, tag = 'output window, operand 0']
    #allocation3 [shape = 's32[2]{0}', space=sflag, size = 0x8, scoped, tag = 'scoped memory for tpu_custom_call.1']
    %8 = vsyncpa [#allocation3], 0
    %s9 = scalar_lea.sflag [#allocation3], 1
    %10 = vsyncpa %s9, 0
    loop: start=0, step=1, limit=10
    $region2: #{tpu_custom_call.1} parent=1 // loop_pre_header
      _
    $region3: #{tpu_custom_call.1} parent=1 // loop_header
      %s12 = sphi 0, %s16
      %p13 = scmp.ge.s32.totalorder %s12, 10
      %s19 = sphi 0, %s31
      %s20 = sphi 0, %s27
      %s21 = sphi 0, %s19
      %s22 = sphi 0, %s20
      %s23 = sphi 0, %s21
      %s24 = sphi 0, %s22
      %s34 = sphi 0, %s36
      %s37 = sphi 0, %s34
      %s38 = sphi 0, %s37
      %s54 = sphi 0, %s38
      %s60 = sphi 0, %s62
      %s63 = sphi 0, %s60
      %s64 = sphi 0, %s63
      %s80 = sphi 0, %s64
      %s86 = sphi 0, %s88
      %s89 = sphi 0, %s86
      %s90 = sphi 0, %s89
      %s106 = sphi 0, %s90
      %s114 = sphi 0, %s116
      %s117 = sphi 0, %s114
      %s118 = sphi 0, %s117
      %s134 = sphi 0, %s118
    $region4: #{tpu_custom_call.1} parent=1 // loop_header_branch
      %15 = sbr.rel (%p13) target = $region8
    $region5: #{tpu_custom_call.1} parent=1 // loop_body
      %s17 = ssub.s32 %s12, 1
      %s18 = ssub.s32 %s12, 2
      %s25 = sadd.s32 1, %s20
      %p26 = scmp.ge.s32.totalorder %s25, 1
      %s27 = scalar_select %p26, 0, %s25
      %s28 = sadd.s32 1, %s19
      %s29 = scalar_select %p26, %s28, %s19
      %p30 = scmp.ge.s32.totalorder %s29, 8
      %s31 = scalar_select %p30, 0, %s29
      %s32 = ssub.s32 %s19, %s31
      %p33 = scmp.eq.s32.totalorder %s32, 0
      %s35 = sadd.s32 %s34, 1
      %s36 = scalar_select %p33, %s34, %s35
      %p39 = pneg %p33
      %p40 = scmp.eq.s32.totalorder %s12, 7
      %p41 = por %p39, %p40
      %p42 = scmp.ne.s32.totalorder %s34, %s37
      %p43 = scmp.eq.s32.totalorder %s12, 0
      %p44 = por %p42, %p43
      %p45 = scmp.ne.s32.totalorder %s34, %s37
      %p46 = scmp.eq.s32.totalorder %s17, 7
      %p47 = por %p45, %p46
      %p48 = scmp.ne.s32.totalorder %s37, %s38
      %p49 = scmp.eq.s32.totalorder %s17, 0
      %p50 = por %p48, %p49
      %p51 = scmp.ne.s32.totalorder %s37, %s38
      %p52 = scmp.eq.s32.totalorder %s18, 7
      %p53 = por %p51, %p52
      %p55 = scmp.ne.s32.totalorder %s38, %s54
      %p56 = scmp.eq.s32.totalorder %s18, 0
      %p57 = por %p55, %p56
      %s58 = ssub.s32 %s20, %s27
      %p59 = scmp.eq.s32.totalorder %s58, 0
      %s61 = sadd.s32 %s60, 1
      %s62 = scalar_select %p59, %s60, %s61
      %p65 = pneg %p59
      %p66 = scmp.eq.s32.totalorder %s12, 7
      %p67 = por %p65, %p66
      %p68 = scmp.ne.s32.totalorder %s60, %s63
      %p69 = scmp.eq.s32.totalorder %s12, 0
      %p70 = por %p68, %p69
      %p71 = scmp.ne.s32.totalorder %s60, %s63
      %p72 = scmp.eq.s32.totalorder %s17, 7
      %p73 = por %p71, %p72
      %p74 = scmp.ne.s32.totalorder %s63, %s64
      %p75 = scmp.eq.s32.totalorder %s17, 0
      %p76 = por %p74, %p75
      %p77 = scmp.ne.s32.totalorder %s63, %s64
      %p78 = scmp.eq.s32.totalorder %s18, 7
      %p79 = por %p77, %p78
      %p81 = scmp.ne.s32.totalorder %s64, %s80
      %p82 = scmp.eq.s32.totalorder %s18, 0
      %p83 = por %p81, %p82
      %s84 = ssub.s32 %s20, %s27
      %p85 = scmp.eq.s32.totalorder %s84, 0
      %s87 = sadd.s32 %s86, 1
      %s88 = scalar_select %p85, %s86, %s87
      %p91 = pneg %p85
      %p92 = scmp.eq.s32.totalorder %s12, 7
      %p93 = por %p91, %p92
      %p94 = scmp.ne.s32.totalorder %s86, %s89
      %p95 = scmp.eq.s32.totalorder %s12, 0
      %p96 = por %p94, %p95
      %p97 = scmp.ne.s32.totalorder %s86, %s89
      %p98 = scmp.eq.s32.totalorder %s17, 7
      %p99 = por %p97, %p98
      %p100 = scmp.ne.s32.totalorder %s89, %s90
      %p101 = scmp.eq.s32.totalorder %s17, 0
      %p102 = por %p100, %p101
      %p103 = scmp.ne.s32.totalorder %s89, %s90
      %p104 = scmp.eq.s32.totalorder %s18, 7
      %p105 = por %p103, %p104
      %p107 = scmp.ne.s32.totalorder %s90, %s106
      %p108 = scmp.eq.s32.totalorder %s18, 0
      %p109 = por %p107, %p108
      %s110 = ssub.s32 %s19, %s31
      %s111 = ssub.s32 %s20, %s27
      %s112 = sor.u32 %s110, %s111
      %p113 = scmp.eq.s32.totalorder %s112, 0
      %s115 = sadd.s32 %s114, 1
      %s116 = scalar_select %p113, %s114, %s115
      %p119 = pneg %p113
      %p120 = scmp.eq.s32.totalorder %s12, 7
      %p121 = por %p119, %p120
      %p122 = scmp.ne.s32.totalorder %s114, %s117
      %p123 = scmp.eq.s32.totalorder %s12, 0
      %p124 = por %p122, %p123
      %p125 = scmp.ne.s32.totalorder %s114, %s117
      %p126 = scmp.eq.s32.totalorder %s17, 7
      %p127 = por %p125, %p126
      %p128 = scmp.ne.s32.totalorder %s117, %s118
      %p129 = scmp.eq.s32.totalorder %s17, 0
      %p130 = por %p128, %p129
      %p131 = scmp.ne.s32.totalorder %s117, %s118
      %p132 = scmp.eq.s32.totalorder %s18, 7
      %p133 = por %p131, %p132
      %p135 = scmp.ne.s32.totalorder %s118, %s134
      %p136 = scmp.eq.s32.totalorder %s18, 0
      %p137 = por %p135, %p136
      %p138 = scmp.le.s32.totalorder 1, %s12
      %p139 = scmp.lt.s32.totalorder %s12, 9
      %p140 = pnand %p138, %p139
      %p141 = pneg %p140
      // Predicated region
      $region9: #{tpu_custom_call.1} parent=5 // pred_check
        _
      $region10: #{tpu_custom_call.1} parent=5 // pred_check_branch
        %143 = sbr.rel (%p140) target = $region12
      $region11: #{tpu_custom_call.1} parent=5 // pred_region
        %s144 = ssub.s32 %s12, 1
        // Predicated region
        $region13: #{tpu_custom_call.1} parent=11 // pred_check
          %p145 = pneg %p76
        $region14: #{tpu_custom_call.1} parent=11 // pred_check_branch
          %147 = sbr.rel (%p145) target = $region16
        $region15: #{tpu_custom_call.1} parent=11 // pred_region
          %p148 = scmp.lt.s32.totalorder %s22, 0
          %s149 = scalar_select %p148, %s22, 0
          %s150 = smul.addr %s149, 4
          %s151 = scalar_lea.vmem %s1, %s150
        $region16: #{tpu_custom_call.1} parent=11 // pred_fallthru
          _
        // Predicated region
        $region17: #{tpu_custom_call.1} parent=11 // pred_check
          %p152 = pneg %p102
        $region18: #{tpu_custom_call.1} parent=11 // pred_check_branch
          %154 = sbr.rel (%p152) target = $region20
        $region19: #{tpu_custom_call.1} parent=11 // pred_region
          %p155 = scmp.lt.s32.totalorder %s22, 0
          %s156 = scalar_select %p155, %s22, 0
          %s157 = scalar_lea.vmem %s2, %s156
        $region20: #{tpu_custom_call.1} parent=11 // pred_fallthru
          _
      $region12: #{tpu_custom_call.1} parent=5 // pred_fallthru
        _
      %p158 = scmp.lt.s32.totalorder %s12, 8
      // Predicated region
      $region21: #{tpu_custom_call.1} parent=5 // pred_check
        %p159 = pneg %p158
      $region22: #{tpu_custom_call.1} parent=5 // pred_check_branch
        %161 = sbr.rel (%p159) target = $region24
      $region23: #{tpu_custom_call.1} parent=5 // pred_region
        // Predicated region
        $region25: #{tpu_custom_call.1} parent=23 // pred_check
          %p162 = pneg %p44
        $region26: #{tpu_custom_call.1} parent=23 // pred_check_branch
          %164 = sbr.rel (%p162) target = $region28
        $region27: #{tpu_custom_call.1} parent=23 // pred_region
          %s165 = smul.u32 32, %s19
          %p166 = scmp.lt.s32.totalorder %s165, 255
          %s167 = scalar_select %p166, %s165, 255
          %s168 = smul.addr %s167, 2
          %s169 = smul.addr %s168, 4
          %s170 = scalar_lea.vmem %s0, %s169
          %s171 = smul.u32 32, %s19
        $region28: #{tpu_custom_call.1} parent=23 // pred_fallthru
          _
      $region24: #{tpu_custom_call.1} parent=5 // pred_fallthru
        _
      %p172 = scmp.le.s32.totalorder 1, %s12
      %p173 = scmp.lt.s32.totalorder %s12, 9
      %p174 = pnand %p172, %p173
      %p175 = pneg %p174
      // Predicated region
      $region29: #{tpu_custom_call.1} parent=5 // pred_check
        _
      $region30: #{tpu_custom_call.1} parent=5 // pred_check_branch
        %177 = sbr.rel (%p174) target = $region32
      $region31: #{tpu_custom_call.1} parent=5 // pred_region
        %s178 = ssub.s32 %s12, 1
        %s179 = smul.u32 32, %s21
        %p180 = scmp.lt.s32.totalorder %s179, 255
        %s181 = scalar_select %p180, %s179, 255
        %s182 = smul.addr %s181, 2
        %s183 = smul.addr %s182, 4
        %s184 = scalar_lea.vmem %s0, %s183
        %p185 = pneg %p50
        %p186 = pneg %p47
        %p187 = scmp.lt.s32.totalorder %s22, 0
        %s188 = scalar_select %p187, %s22, 0
        %s189 = smul.addr %s188, 4
        %s190 = scalar_lea.vmem %s1, %s189
        %p191 = pneg %p76
        %p192 = pneg %p73
        %p193 = scmp.lt.s32.totalorder %s22, 0
        %s194 = scalar_select %p193, %s22, 0
        %s195 = scalar_lea.vmem %s2, %s194
        %p196 = pneg %p102
        %p197 = pneg %p99
        %p198 = pneg %p130
        %p199 = pneg %p127
        %s200 = sand.u32 %s117, 1
        %s201 = scalar_lea.sflag [#allocation3], %s200
        %s202 = sand.u32 %s117, 1
        %s203 = smul.addr %s202, 128
        %s204 = scalar_lea.vmem [#allocation2], %s203
        %s205 = smul.u32 32, %s21
        %p206 = scmp.lt.s32.totalorder %s205, 255
        %s207 = scalar_select %p206, %s205, 255
        %s208 = smul.addr %s207, 2
        %s209 = smul.addr %s208, 4
        %s210 = scalar_lea.vmem %s0, %s209
        %s211 = smul.u32 32, %s21
        %p212 = scmp.lt.s32.totalorder %s22, 0
        %s213 = scalar_select %p212, %s22, 0
        %s214 = smul.addr %s213, 4
        %s215 = scalar_lea.vmem %s1, %s214
        %p216 = scmp.lt.s32.totalorder %s22, 0
        %s217 = scalar_select %p216, %s22, 0
        %s218 = scalar_lea.vmem %s2, %s217
        %s219 = smul.u32 32, %s21
        %v221 = vld [vmem:[%s210] sm:$0xff]
        %v222 = vld [vmem:[%s210 + $0x8] sm:$0xff]
        %v223 = vld [vmem:[%s210 + $0x10] sm:$0xff]
        %v224 = vld [vmem:[%s210 + $0x18] sm:$0xff]
        %v225 = vld [vmem:[%s210 + $0x20] sm:$0xff]
        %v226 = vld [vmem:[%s210 + $0x28] sm:$0xff]
        %v227 = vld [vmem:[%s210 + $0x30] sm:$0xff]
        %v228 = vld [vmem:[%s210 + $0x38] sm:$0xff]
        %v229 = vld [vmem:[%s210 + $0x40] sm:$0xff]
        %v230 = vld [vmem:[%s210 + $0x48] sm:$0xff]
        %v231 = vld [vmem:[%s210 + $0x50] sm:$0xff]
        %v232 = vld [vmem:[%s210 + $0x58] sm:$0xff]
        %v233 = vld [vmem:[%s210 + $0x60] sm:$0xff]
        %v234 = vld [vmem:[%s210 + $0x68] sm:$0xff]
        %v235 = vld [vmem:[%s210 + $0x70] sm:$0xff]
        %v236 = vld [vmem:[%s210 + $0x78] sm:$0xff]
        %v237 = vld [vmem:[%s210 + $0x80] sm:$0xff]
        %v238 = vld [vmem:[%s210 + $0x88] sm:$0xff]
        %v239 = vld [vmem:[%s210 + $0x90] sm:$0xff]
        %v240 = vld [vmem:[%s210 + $0x98] sm:$0xff]
        %v241 = vld [vmem:[%s210 + $0xa0] sm:$0xff]
        %v242 = vld [vmem:[%s210 + $0xa8] sm:$0xff]
        %v243 = vld [vmem:[%s210 + $0xb0] sm:$0xff]
        %v244 = vld [vmem:[%s210 + $0xb8] sm:$0xff]
        %v245 = vld [vmem:[%s210 + $0xc0] sm:$0xff]
        %v246 = vld [vmem:[%s210 + $0xc8] sm:$0xff]
        %v247 = vld [vmem:[%s210 + $0xd0] sm:$0xff]
        %v248 = vld [vmem:[%s210 + $0xd8] sm:$0xff]
        %v249 = vld [vmem:[%s210 + $0xe0] sm:$0xff]
        %v250 = vld [vmem:[%s210 + $0xe8] sm:$0xff]
        %v251 = vld [vmem:[%s210 + $0xf0] sm:$0xff]
        %v252 = vld [vmem:[%s210 + $0xf8] sm:$0xff]
        %v253 = vld [vmem:[%s215] sm:$0xf]
        %v254 = vld [vmem:[%s215 + $0x4] sm:$0xf]
        %v255 = vld [vmem:[%s215 + $0x8] sm:$0xf]
        %v256 = vld [vmem:[%s215 + $0xc] sm:$0xf]
        %v257 = vld [vmem:[%s215 + $0x10] sm:$0xf]
        %v258 = vld [vmem:[%s215 + $0x14] sm:$0xf]
        %v259 = vld [vmem:[%s215 + $0x18] sm:$0xf]
        %v260 = vld [vmem:[%s215 + $0x1c] sm:$0xf]
        %v261 = vld [vmem:[%s215 + $0x20] sm:$0xf]
        %v262 = vld [vmem:[%s215 + $0x24] sm:$0xf]
        %v263 = vld [vmem:[%s215 + $0x28] sm:$0xf]
        %v264 = vld [vmem:[%s215 + $0x2c] sm:$0xf]
        %v265 = vld [vmem:[%s215 + $0x30] sm:$0xf]
        %v266 = vld [vmem:[%s215 + $0x34] sm:$0xf]
        %v267 = vld [vmem:[%s215 + $0x38] sm:$0xf]
        %v268 = vld [vmem:[%s215 + $0x3c] sm:$0xf]
        %v269 = vld [vmem:[%s215 + $0x40] sm:$0xf]
        %v270 = vld [vmem:[%s215 + $0x44] sm:$0xf]
        %v271 = vld [vmem:[%s215 + $0x48] sm:$0xf]
        %v272 = vld [vmem:[%s215 + $0x4c] sm:$0xf]
        %v273 = vld [vmem:[%s218] sm:$0x1]
        %v275 = vlaneseq
        %v276 = vshrl.u32 %v275, 7
        %v277 = vsub.s32 0, %v276
        %v278 = vrot.slane %v273, %v277
        %v312 = vunpack.c.l.b16 %v221
        %v313 = vunpack.c.h.b16 %v221
        %v314 = vunpack.c.l.b16 %v222
        %v315 = vunpack.c.h.b16 %v222
        %v316 = vunpack.c.l.b16 %v223
        %v317 = vunpack.c.h.b16 %v223
        %v318 = vunpack.c.l.b16 %v224
        %v319 = vunpack.c.h.b16 %v224
        %v320 = vunpack.c.l.b16 %v225
        %v321 = vunpack.c.h.b16 %v225
        %v322 = vunpack.c.l.b16 %v226
        %v323 = vunpack.c.h.b16 %v226
        %v324 = vunpack.c.l.b16 %v227
        %v325 = vunpack.c.h.b16 %v227
        %v326 = vunpack.c.l.b16 %v228
        %v327 = vunpack.c.h.b16 %v228
        %v328 = vunpack.c.l.b16 %v229
        %v329 = vunpack.c.h.b16 %v229
        %v330 = vunpack.c.l.b16 %v230
        %v331 = vunpack.c.h.b16 %v230
        %v332 = vunpack.c.l.b16 %v231
        %v333 = vunpack.c.h.b16 %v231
        %v334 = vunpack.c.l.b16 %v232
        %v335 = vunpack.c.h.b16 %v232
        %v336 = vunpack.c.l.b16 %v233
        %v337 = vunpack.c.h.b16 %v233
        %v338 = vunpack.c.l.b16 %v234
        %v339 = vunpack.c.h.b16 %v234
        %v340 = vunpack.c.l.b16 %v235
        %v341 = vunpack.c.h.b16 %v235
        %v342 = vunpack.c.l.b16 %v236
        %v343 = vunpack.c.h.b16 %v236
        %v344 = vunpack.c.l.b16 %v237
        %v345 = vunpack.c.h.b16 %v237
        %v346 = vunpack.c.l.b16 %v238
        %v347 = vunpack.c.h.b16 %v238
        %v348 = vunpack.c.l.b16 %v239
        %v349 = vunpack.c.h.b16 %v239
        %v350 = vunpack.c.l.b16 %v240
        %v351 = vunpack.c.h.b16 %v240
        %v352 = vunpack.c.l.b16 %v241
        %v353 = vunpack.c.h.b16 %v241
        %v354 = vunpack.c.l.b16 %v242
        %v355 = vunpack.c.h.b16 %v242
        %v356 = vunpack.c.l.b16 %v243
        %v357 = vunpack.c.h.b16 %v243
        %v358 = vunpack.c.l.b16 %v244
        %v359 = vunpack.c.h.b16 %v244
        %v360 = vunpack.c.l.b16 %v245
        %v361 = vunpack.c.h.b16 %v245
        %v362 = vunpack.c.l.b16 %v246
        %v363 = vunpack.c.h.b16 %v246
        %v364 = vunpack.c.l.b16 %v247
        %v365 = vunpack.c.h.b16 %v247
        %v366 = vunpack.c.l.b16 %v248
        %v367 = vunpack.c.h.b16 %v248
        %v368 = vunpack.c.l.b16 %v249
        %v369 = vunpack.c.h.b16 %v249
        %v370 = vunpack.c.l.b16 %v250
        %v371 = vunpack.c.h.b16 %v250
        %v372 = vunpack.c.l.b16 %v251
        %v373 = vunpack.c.h.b16 %v251
        %v374 = vunpack.c.l.b16 %v252
        %v375 = vunpack.c.h.b16 %v252
        %v376 = vpack.c.b16 %v314, %v312
        %v377 = vpack.c.b16 %v315, %v313
        %v378 = vpack.c.b16 %v318, %v316
        %v379 = vpack.c.b16 %v319, %v317
        %v380 = vpack.c.b16 %v322, %v320
        %v381 = vpack.c.b16 %v323, %v321
        %v382 = vpack.c.b16 %v326, %v324
        %v383 = vpack.c.b16 %v327, %v325
        %v384 = vpack.c.b16 %v330, %v328
        %v385 = vpack.c.b16 %v331, %v329
        %v386 = vpack.c.b16 %v334, %v332
        %v387 = vpack.c.b16 %v335, %v333
        %v388 = vpack.c.b16 %v338, %v336
        %v389 = vpack.c.b16 %v339, %v337
        %v390 = vpack.c.b16 %v342, %v340
        %v391 = vpack.c.b16 %v343, %v341
        %v392 = vpack.c.b16 %v346, %v344
        %v393 = vpack.c.b16 %v347, %v345
        %v394 = vpack.c.b16 %v350, %v348
        %v395 = vpack.c.b16 %v351, %v349
        %v396 = vpack.c.b16 %v354, %v352
        %v397 = vpack.c.b16 %v355, %v353
        %v398 = vpack.c.b16 %v358, %v356
        %v399 = vpack.c.b16 %v359, %v357
        %v400 = vpack.c.b16 %v362, %v360
        %v401 = vpack.c.b16 %v363, %v361
        %v402 = vpack.c.b16 %v366, %v364
        %v403 = vpack.c.b16 %v367, %v365
        %v404 = vpack.c.b16 %v370, %v368
        %v405 = vpack.c.b16 %v371, %v369
        %v406 = vpack.c.b16 %v374, %v372
        %v407 = vpack.c.b16 %v375, %v373
        %v444 = vunpack.c.l.b16 %v253
        %v445 = vunpack.c.l.b16 %v254
        %v446 = vunpack.c.l.b16 %v255
        %v447 = vunpack.c.l.b16 %v256
        %v448 = vunpack.c.l.b16 %v257
        %v449 = vunpack.c.l.b16 %v258
        %v450 = vunpack.c.l.b16 %v259
        %v451 = vunpack.c.l.b16 %v260
        %v452 = vunpack.c.l.b16 %v261
        %v453 = vunpack.c.l.b16 %v262
        %v454 = vunpack.c.l.b16 %v263
        %v455 = vunpack.c.l.b16 %v264
        %v456 = vunpack.c.l.b16 %v265
        %v457 = vunpack.c.l.b16 %v266
        %v458 = vunpack.c.l.b16 %v267
        %v459 = vunpack.c.l.b16 %v268
        %v460 = vunpack.c.l.b16 %v269
        %v461 = vunpack.c.l.b16 %v270
        %v462 = vunpack.c.l.b16 %v271
        %v463 = vunpack.c.l.b16 %v272
        %v464 = vpack.c.b16 %v445, %v444
        %v465 = vpack.c.b16 %v447, %v446
        %v466 = vpack.c.b16 %v449, %v448
        %v467 = vpack.c.b16 %v451, %v450
        %v468 = vpack.c.b16 %v453, %v452
        %v469 = vpack.c.b16 %v455, %v454
        %v470 = vpack.c.b16 %v457, %v456
        %v471 = vpack.c.b16 %v459, %v458
        %v472 = vpack.c.b16 %v461, %v460
        %v473 = vpack.c.b16 %v463, %v462
        %vm484 = vcmask 261120
        %v486 = vsel %vm484, %v377, 0
        %v489 = vsel %vm484, %v379, 0
        %v492 = vsel %vm484, %v381, 0
        %v495 = vsel %vm484, %v383, 0
        %v498 = vsel %vm484, %v385, 0
        %v501 = vsel %vm484, %v387, 0
        %v504 = vsel %vm484, %v389, 0
        %v507 = vsel %vm484, %v391, 0
        %v510 = vsel %vm484, %v393, 0
        %v513 = vsel %vm484, %v395, 0
        %v516 = vsel %vm484, %v397, 0
        %v519 = vsel %vm484, %v399, 0
        %v522 = vsel %vm484, %v401, 0
        %v525 = vsel %vm484, %v403, 0
        %v528 = vsel %vm484, %v405, 0
        %v531 = vsel %vm484, %v407, 0
        %533 = vmatprep.subr.bf16.mxu0 0
        %534 = vmatpush1.bf16.msra.mxu0 %v464
        %535 = vmatprep.subr.bf16.mxu0 0
        %536 = vmatpush1.bf16.msra.mxu0 %v465
        %537 = vmatprep.subr.bf16.mxu0 0
        %538 = vmatpush1.bf16.msra.mxu0 %v466
        %539 = vmatprep.subr.bf16.mxu0 0
        %540 = vmatpush1.bf16.msra.mxu0 %v467
        %541 = vmatprep.subr.bf16.mxu0 0
        %542 = vmatpush1.bf16.msra.mxu0 %v468
        %543 = vmatprep.subr.bf16.mxu0 0
        %544 = vmatpush1.bf16.msra.mxu0 %v469
        %545 = vmatprep.subr.bf16.mxu0 0
        %546 = vmatpush1.bf16.msra.mxu0 %v470
        %547 = vmatprep.subr.bf16.mxu0 0
        %548 = vmatpush1.bf16.msra.mxu0 %v471
        %549 = vmatprep.subr.bf16.mxu0 0
        %550 = vmatpush1.bf16.msra.mxu0 %v472
        %551 = vmatprep.subr.bf16.mxu0 0
        %552 = vmatpush1.bf16.msra.mxu0 %v473
        %553 = vmatprep.subr.bf16.mxu0 0
        %554 = vmatpush1.bf16.msra.mxu0 0
        %555 = vmatprep.subr.bf16.mxu0 0
        %556 = vmatpush1.bf16.msra.mxu0 0
        %557 = vmatprep.subr.bf16.mxu0 0
        %558 = vmatpush1.bf16.msra.mxu0 0
        %559 = vmatprep.subr.bf16.mxu0 0
        %560 = vmatpush1.bf16.msra.mxu0 0
        %561 = vmatprep.subr.bf16.mxu0 0
        %562 = vmatpush1.bf16.msra.mxu0 0
        %563 = vmatprep.subr.bf16.mxu0 0
        %564 = vmatpush1.bf16.msra.mxu0 0
        %565 = vmatprep.mubr.bf16.mxu0 %v486
        %566 = vmatmul.mubr.bf16.gmra.mrb[0].mxu0 %v376
        %v567 = vpop.f32.mrb[0].mxu0
        %v568 = vadd.f32 %v278, %v567
        %v569 = vpop.f32.mrb[0].mxu0
        %v570 = vpop.f32.mrb[0].mxu0
        %v571 = vadd.f32 %v278, %v570
        %v572 = vpop.f32.mrb[0].mxu0
        %573 = vmatprep.mubr.bf16.mxu0 %v489
        %574 = vmatmul.mubr.bf16.gmra.mrb[0].mxu0 %v378
        %v575 = vpop.f32.mrb[0].mxu0
        %v576 = vadd.f32 %v278, %v575
        %v577 = vpop.f32.mrb[0].mxu0
        %v578 = vpop.f32.mrb[0].mxu0
        %v579 = vadd.f32 %v278, %v578
        %v580 = vpop.f32.mrb[0].mxu0
        %581 = vmatprep.mubr.bf16.mxu0 %v492
        %582 = vmatmul.mubr.bf16.gmra.mrb[0].mxu0 %v380
        %v583 = vpop.f32.mrb[0].mxu0
        %v584 = vadd.f32 %v278, %v583
        %v585 = vpop.f32.mrb[0].mxu0
        %v586 = vpop.f32.mrb[0].mxu0
        %v587 = vadd.f32 %v278, %v586
        %v588 = vpop.f32.mrb[0].mxu0
        %589 = vmatprep.mubr.bf16.mxu0 %v495
        %590 = vmatmul.mubr.bf16.gmra.mrb[0].mxu0 %v382
        %v591 = vpop.f32.mrb[0].mxu0
        %v592 = vadd.f32 %v278, %v591
        %v593 = vpop.f32.mrb[0].mxu0
        %v594 = vpop.f32.mrb[0].mxu0
        %v595 = vadd.f32 %v278, %v594
        %v596 = vpop.f32.mrb[0].mxu0
        %597 = vmatprep.mubr.bf16.mxu0 %v498
        %598 = vmatmul.mubr.bf16.gmra.mrb[0].mxu0 %v384
        %v599 = vpop.f32.mrb[0].mxu0
        %v600 = vadd.f32 %v278, %v599
        %v601 = vpop.f32.mrb[0].mxu0
        %v602 = vpop.f32.mrb[0].mxu0
        %v603 = vadd.f32 %v278, %v602
        %v604 = vpop.f32.mrb[0].mxu0
        %605 = vmatprep.mubr.bf16.mxu0 %v501
        %606 = vmatmul.mubr.bf16.gmra.mrb[0].mxu0 %v386
        %v607 = vpop.f32.mrb[0].mxu0
        %v608 = vadd.f32 %v278, %v607
        %v609 = vpop.f32.mrb[0].mxu0
        %v610 = vpop.f32.mrb[0].mxu0
        %v611 = vadd.f32 %v278, %v610
        %v612 = vpop.f32.mrb[0].mxu0
        %613 = vmatprep.mubr.bf16.mxu0 %v504
        %614 = vmatmul.mubr.bf16.gmra.mrb[0].mxu0 %v388
        %v615 = vpop.f32.mrb[0].mxu0
        %v616 = vadd.f32 %v278, %v615
        %v617 = vpop.f32.mrb[0].mxu0
        %v618 = vpop.f32.mrb[0].mxu0
        %v619 = vadd.f32 %v278, %v618
        %v620 = vpop.f32.mrb[0].mxu0
        %621 = vmatprep.mubr.bf16.mxu0 %v507
        %622 = vmatmul.mubr.bf16.gmra.mrb[0].mxu0 %v390
        %v623 = vpop.f32.mrb[0].mxu0
        %v624 = vadd.f32 %v278, %v623
        %v625 = vpop.f32.mrb[0].mxu0
        %v626 = vpop.f32.mrb[0].mxu0
        %v627 = vadd.f32 %v278, %v626
        %v628 = vpop.f32.mrb[0].mxu0
        %629 = vmatprep.mubr.bf16.mxu0 %v510
        %630 = vmatmul.mubr.bf16.gmra.mrb[0].mxu0 %v392
        %v631 = vpop.f32.mrb[0].mxu0
        %v632 = vadd.f32 %v278, %v631
        %v633 = vpop.f32.mrb[0].mxu0
        %v634 = vpop.f32.mrb[0].mxu0
        %v635 = vadd.f32 %v278, %v634
        %v636 = vpop.f32.mrb[0].mxu0
        %637 = vmatprep.mubr.bf16.mxu0 %v513
        %638 = vmatmul.mubr.bf16.gmra.mrb[0].mxu0 %v394
        %v639 = vpop.f32.mrb[0].mxu0
        %v640 = vadd.f32 %v278, %v639
        %v641 = vpop.f32.mrb[0].mxu0
        %v642 = vpop.f32.mrb[0].mxu0
        %v643 = vadd.f32 %v278, %v642
        %v644 = vpop.f32.mrb[0].mxu0
        %645 = vmatprep.mubr.bf16.mxu0 %v516
        %646 = vmatmul.mubr.bf16.gmra.mrb[0].mxu0 %v396
        %v647 = vpop.f32.mrb[0].mxu0
        %v648 = vadd.f32 %v278, %v647
        %v649 = vpop.f32.mrb[0].mxu0
        %v650 = vpop.f32.mrb[0].mxu0
        %v651 = vadd.f32 %v278, %v650
        %v652 = vpop.f32.mrb[0].mxu0
        %653 = vmatprep.mubr.bf16.mxu0 %v519
        %654 = vmatmul.mubr.bf16.gmra.mrb[0].mxu0 %v398
        %v655 = vpop.f32.mrb[0].mxu0
        %v656 = vadd.f32 %v278, %v655
        %v657 = vpop.f32.mrb[0].mxu0
        %v658 = vpop.f32.mrb[0].mxu0
        %v659 = vadd.f32 %v278, %v658
        %v660 = vpop.f32.mrb[0].mxu0
        %661 = vmatprep.mubr.bf16.mxu0 %v522
        %662 = vmatmul.mubr.bf16.gmra.mrb[0].mxu0 %v400
        %v663 = vpop.f32.mrb[0].mxu0
        %v664 = vadd.f32 %v278, %v663
        %v665 = vpop.f32.mrb[0].mxu0
        %v666 = vpop.f32.mrb[0].mxu0
        %v667 = vadd.f32 %v278, %v666
        %v668 = vpop.f32.mrb[0].mxu0
        %669 = vmatprep.mubr.bf16.mxu0 %v525
        %670 = vmatmul.mubr.bf16.gmra.mrb[0].mxu0 %v402
        %v671 = vpop.f32.mrb[0].mxu0
        %v672 = vadd.f32 %v278, %v671
        %v673 = vpop.f32.mrb[0].mxu0
        %v674 = vpop.f32.mrb[0].mxu0
        %v675 = vadd.f32 %v278, %v674
        %v676 = vpop.f32.mrb[0].mxu0
        %677 = vmatprep.mubr.bf16.mxu0 %v528
        %678 = vmatmul.mubr.bf16.gmra.mrb[0].mxu0 %v404
        %v679 = vpop.f32.mrb[0].mxu0
        %v680 = vadd.f32 %v278, %v679
        %v681 = vpop.f32.mrb[0].mxu0
        %v682 = vpop.f32.mrb[0].mxu0
        %v683 = vadd.f32 %v278, %v682
        %v684 = vpop.f32.mrb[0].mxu0
        %685 = vmatprep.mubr.bf16.mxu0 %v531
        %686 = vmatmul.mubr.bf16.gmra.mrb[0].mxu0 %v406
        %v687 = vpop.f32.mrb[0].mxu0
        %v688 = vadd.f32 %v278, %v687
        %v689 = vpop.f32.mrb[0].mxu0
        %v690 = vpop.f32.mrb[0].mxu0
        %v691 = vadd.f32 %v278, %v690
        %v692 = vpop.f32.mrb[0].mxu0
        %693 = vdwg.mxu0
        %v694 = vmax.f32 %v568, 0.0
        %v695 = vmax.f32 %v571, 0.0
        %v696 = vmax.f32 %v576, 0.0
        %v697 = vmax.f32 %v579, 0.0
        %v698 = vmax.f32 %v584, 0.0
        %v699 = vmax.f32 %v587, 0.0
        %v700 = vmax.f32 %v592, 0.0
        %v701 = vmax.f32 %v595, 0.0
        %v702 = vmax.f32 %v600, 0.0
        %v703 = vmax.f32 %v603, 0.0
        %v704 = vmax.f32 %v608, 0.0
        %v705 = vmax.f32 %v611, 0.0
        %v706 = vmax.f32 %v616, 0.0
        %v707 = vmax.f32 %v619, 0.0
        %v708 = vmax.f32 %v624, 0.0
        %v709 = vmax.f32 %v627, 0.0
        %v710 = vmax.f32 %v632, 0.0
        %v711 = vmax.f32 %v635, 0.0
        %v712 = vmax.f32 %v640, 0.0
        %v713 = vmax.f32 %v643, 0.0
        %v714 = vmax.f32 %v648, 0.0
        %v715 = vmax.f32 %v651, 0.0
        %v716 = vmax.f32 %v656, 0.0
        %v717 = vmax.f32 %v659, 0.0
        %v718 = vmax.f32 %v664, 0.0
        %v719 = vmax.f32 %v667, 0.0
        %v720 = vmax.f32 %v672, 0.0
        %v721 = vmax.f32 %v675, 0.0
        %v722 = vmax.f32 %v680, 0.0
        %v723 = vmax.f32 %v683, 0.0
        %v724 = vmax.f32 %v688, 0.0
        %v725 = vmax.f32 %v691, 0.0
        %v726 = vpack.c.bf16 %v695, %v694
        %v727 = vpack.c.bf16 %v697, %v696
        %v728 = vpack.c.bf16 %v699, %v698
        %v729 = vpack.c.bf16 %v701, %v700
        %v730 = vpack.c.bf16 %v703, %v702
        %v731 = vpack.c.bf16 %v705, %v704
        %v732 = vpack.c.bf16 %v707, %v706
        %v733 = vpack.c.bf16 %v709, %v708
        %v734 = vpack.c.bf16 %v711, %v710
        %v735 = vpack.c.bf16 %v713, %v712
        %v736 = vpack.c.bf16 %v715, %v714
        %v737 = vpack.c.bf16 %v717, %v716
        %v738 = vpack.c.bf16 %v719, %v718
        %v739 = vpack.c.bf16 %v721, %v720
        %v740 = vpack.c.bf16 %v723, %v722
        %v741 = vpack.c.bf16 %v725, %v724
        %v758 = vunpack.c.l.b16 %v726
        %v759 = vunpack.c.h.b16 %v726
        %v760 = vunpack.c.l.b16 %v727
        %v761 = vunpack.c.h.b16 %v727
        %v762 = vunpack.c.l.b16 %v728
        %v763 = vunpack.c.h.b16 %v728
        %v764 = vunpack.c.l.b16 %v729
        %v765 = vunpack.c.h.b16 %v729
        %v766 = vunpack.c.l.b16 %v730
        %v767 = vunpack.c.h.b16 %v730
        %v768 = vunpack.c.l.b16 %v731
        %v769 = vunpack.c.h.b16 %v731
        %v770 = vunpack.c.l.b16 %v732
        %v771 = vunpack.c.h.b16 %v732
        %v772 = vunpack.c.l.b16 %v733
        %v773 = vunpack.c.h.b16 %v733
        %v774 = vunpack.c.l.b16 %v734
        %v775 = vunpack.c.h.b16 %v734
        %v776 = vunpack.c.l.b16 %v735
        %v777 = vunpack.c.h.b16 %v735
        %v778 = vunpack.c.l.b16 %v736
        %v779 = vunpack.c.h.b16 %v736
        %v780 = vunpack.c.l.b16 %v737
        %v781 = vunpack.c.h.b16 %v737
        %v782 = vunpack.c.l.b16 %v738
        %v783 = vunpack.c.h.b16 %v738
        %v784 = vunpack.c.l.b16 %v739
        %v785 = vunpack.c.h.b16 %v739
        %v786 = vunpack.c.l.b16 %v740
        %v787 = vunpack.c.h.b16 %v740
        %v788 = vunpack.c.l.b16 %v741
        %v789 = vunpack.c.h.b16 %v741
        %v790 = vpack.c.b16 %v758, %v758
        %v791 = vpack.c.b16 %v759, %v759
        %v792 = vpack.c.b16 %v760, %v760
        %v793 = vpack.c.b16 %v761, %v761
        %v794 = vpack.c.b16 %v762, %v762
        %v795 = vpack.c.b16 %v763, %v763
        %v796 = vpack.c.b16 %v764, %v764
        %v797 = vpack.c.b16 %v765, %v765
        %v798 = vpack.c.b16 %v766, %v766
        %v799 = vpack.c.b16 %v767, %v767
        %v800 = vpack.c.b16 %v768, %v768
        %v801 = vpack.c.b16 %v769, %v769
        %v802 = vpack.c.b16 %v770, %v770
        %v803 = vpack.c.b16 %v771, %v771
        %v804 = vpack.c.b16 %v772, %v772
        %v805 = vpack.c.b16 %v773, %v773
        %v806 = vpack.c.b16 %v774, %v774
        %v807 = vpack.c.b16 %v775, %v775
        %v808 = vpack.c.b16 %v776, %v776
        %v809 = vpack.c.b16 %v777, %v777
        %v810 = vpack.c.b16 %v778, %v778
        %v811 = vpack.c.b16 %v779, %v779
        %v812 = vpack.c.b16 %v780, %v780
        %v813 = vpack.c.b16 %v781, %v781
        %v814 = vpack.c.b16 %v782, %v782
        %v815 = vpack.c.b16 %v783, %v783
        %v816 = vpack.c.b16 %v784, %v784
        %v817 = vpack.c.b16 %v785, %v785
        %v818 = vpack.c.b16 %v786, %v786
        %v819 = vpack.c.b16 %v787, %v787
        %v820 = vpack.c.b16 %v788, %v788
        %v821 = vpack.c.b16 %v789, %v789
        %854 = vst [vmem:[%s204] sm:$0xf] %v790
        %855 = vst [vmem:[%s204 + $0x4] sm:$0xf] %v791
        %856 = vst [vmem:[%s204 + $0x8] sm:$0xf] %v792
        %857 = vst [vmem:[%s204 + $0xc] sm:$0xf] %v793
        %858 = vst [vmem:[%s204 + $0x10] sm:$0xf] %v794
        %859 = vst [vmem:[%s204 + $0x14] sm:$0xf] %v795
        %860 = vst [vmem:[%s204 + $0x18] sm:$0xf] %v796
        %861 = vst [vmem:[%s204 + $0x1c] sm:$0xf] %v797
        %862 = vst [vmem:[%s204 + $0x20] sm:$0xf] %v798
        %863 = vst [vmem:[%s204 + $0x24] sm:$0xf] %v799
        %864 = vst [vmem:[%s204 + $0x28] sm:$0xf] %v800
        %865 = vst [vmem:[%s204 + $0x2c] sm:$0xf] %v801
        %866 = vst [vmem:[%s204 + $0x30] sm:$0xf] %v802
        %867 = vst [vmem:[%s204 + $0x34] sm:$0xf] %v803
        %868 = vst [vmem:[%s204 + $0x38] sm:$0xf] %v804
        %869 = vst [vmem:[%s204 + $0x3c] sm:$0xf] %v805
        %870 = vst [vmem:[%s204 + $0x40] sm:$0xf] %v806
        %871 = vst [vmem:[%s204 + $0x44] sm:$0xf] %v807
        %872 = vst [vmem:[%s204 + $0x48] sm:$0xf] %v808
        %873 = vst [vmem:[%s204 + $0x4c] sm:$0xf] %v809
        %874 = vst [vmem:[%s204 + $0x50] sm:$0xf] %v810
        %875 = vst [vmem:[%s204 + $0x54] sm:$0xf] %v811
        %876 = vst [vmem:[%s204 + $0x58] sm:$0xf] %v812
        %877 = vst [vmem:[%s204 + $0x5c] sm:$0xf] %v813
        %878 = vst [vmem:[%s204 + $0x60] sm:$0xf] %v814
        %879 = vst [vmem:[%s204 + $0x64] sm:$0xf] %v815
        %880 = vst [vmem:[%s204 + $0x68] sm:$0xf] %v816
        %881 = vst [vmem:[%s204 + $0x6c] sm:$0xf] %v817
        %882 = vst [vmem:[%s204 + $0x70] sm:$0xf] %v818
        %883 = vst [vmem:[%s204 + $0x74] sm:$0xf] %v819
        %884 = vst [vmem:[%s204 + $0x78] sm:$0xf] %v820
        %885 = vst [vmem:[%s204 + $0x7c] sm:$0xf] %v821
        %s886 = sand.u32 %s117, 1
        %s887 = scalar_lea.sflag [#allocation3], %s886
        %s888 = sand.u32 %s117, 1
        %s889 = smul.addr %s888, 128
        %s890 = scalar_lea.vmem [#allocation2], %s889
        // Predicated region
        $region33: #{tpu_custom_call.1} parent=31 // pred_check
          %p891 = pneg %p127
        $region34: #{tpu_custom_call.1} parent=31 // pred_check_branch
          %893 = sbr.rel (%p891) target = $region36
        $region35: #{tpu_custom_call.1} parent=31 // pred_region
          %s894 = smul.u32 32, %s21
          %s896 = ssub.s32 2048, 2048
          %897 = vsyncadd %s887, %s896
          %s898 = sadd.s32 %s22, %s894
          %s899 = smul.addr %s898, 64
          %s900 = scalar_lea.hbm %s3, %s899
          %s901 = sshll.u32 %s890, 4
          %s902 = int_to_ptr.vmem [resolvable:$true] %s901
          %907 = dma.vmem_to_hbm [thread:$0]  %s902, 2048, %s900, %s887, 64, 64, 4
        $region36: #{tpu_custom_call.1} parent=31 // pred_fallthru
          _
      $region32: #{tpu_custom_call.1} parent=5 // pred_fallthru
        _
      %p908 = scmp.le.s32.totalorder 2, %s12
      // Predicated region
      $region37: #{tpu_custom_call.1} parent=5 // pred_check
        %p909 = pneg %p908
      $region38: #{tpu_custom_call.1} parent=5 // pred_check_branch
        %911 = sbr.rel (%p909) target = $region40
      $region39: #{tpu_custom_call.1} parent=5 // pred_region
        %s912 = ssub.s32 %s12, 2
        // Predicated region
        $region41: #{tpu_custom_call.1} parent=39 // pred_check
          %p913 = pneg %p133
        $region42: #{tpu_custom_call.1} parent=39 // pred_check_branch
          %915 = sbr.rel (%p913) target = $region44
        $region43: #{tpu_custom_call.1} parent=39 // pred_region
          %s916 = sand.u32 %s118, 1
          %s917 = scalar_lea.sflag [#allocation3], %s916
          %s918 = sand.u32 %s118, 1
          %s919 = smul.addr %s918, 128
          %s920 = scalar_lea.vmem [#allocation2], %s919
          %921 = dma.done %s917, 2048
        $region44: #{tpu_custom_call.1} parent=39 // pred_fallthru
          _
      $region40: #{tpu_custom_call.1} parent=5 // pred_fallthru
        _
    $region6: #{tpu_custom_call.1} parent=1 // loop_footer
      %s16 = sadd.s32 1, %s12
    $region7: #{tpu_custom_call.1} parent=1 // loop_footer_branch
      %11 = sbr.rel target = $region3
    $region8: #{tpu_custom_call.1} parent=1 // loop_exit
      _
    %922 = vsyncpa [#allocation3], 1
    %s923 = scalar_lea.sflag [#allocation3], 1
    %924 = vsyncpa %s923, 1

</llo_original>
